<compile_context>
chip_gen: v5e
topology: v5e:2x2
jax: 0.10.0
libtpu: 0.0.40
codegen_flags: <defaults>
</compile_context>

<pallas_src>
import functools

import jax
import jax.numpy as jnp
from jax import lax
from jax.experimental import pallas as pl
from jax.experimental.pallas import tpu as pltpu

_LANES = 128
_SUBLANES = 8
_MAX_BLOCK_TOKENS = 256
_MAX_ONEHOT_VOCAB = 2048                   # fast path: one-hot gather vocab limit
_TABLE_VMEM_BUDGET = 4 * 1024 * 1024       # fast path: table must fit comfortably
_VMEM_WORKSET_BUDGET = 16 * 1024 * 1024    # per-kernel working-set target
_VMEM_LIMIT = 32 * 1024 * 1024             # explicit scoped-VMEM limit (v5e/v6e/v7x safe)


def _round_up(x, m):
    return ((x + m - 1) // m) * m


# ----------------------------- token tiling -------------------------------- #

def _prep_ids(ids_flat, vocab, block_tokens, tm_cap):
    """Clamp ids, pick a token tile (multiple of 8, VMEM-capped), pad the grid."""
    num_tokens = ids_flat.shape[0]
    if block_tokens is None:
        block_tokens = min(_MAX_BLOCK_TOKENS, _round_up(num_tokens, _SUBLANES))
    tm = max(_SUBLANES, _round_up(min(block_tokens, tm_cap), _SUBLANES))
    # Prefer >= 2 grid steps: lets the "parallel" fast path use both v7x
    # TensorCores and primes the HBM path's cross-tile DMA prefetch pipeline.
    if _round_up(num_tokens, tm) // tm < 2 and tm > _SUBLANES:
        tm = max(_SUBLANES, _round_up(tm // 2, _SUBLANES))
    padded = _round_up(num_tokens, tm)
    ids = jnp.clip(ids_flat.astype(jnp.int32), 0, vocab - 1)
    ids = jnp.pad(ids, (0, padded - num_tokens))
    return ids, padded, tm


# ----------------------------- fast-path kernels --------------------------- #
# Whole table lives in VMEM; gather = one-hot MXU matmul, one lane-dense store.

def _onehot_gather_kernel(ids_ref, tbl_ref, o_ref, *, vocab):
    ids = ids_ref[...]                                           # (tm, 1) int32
    iota = lax.broadcasted_iota(jnp.int32, (ids.shape[0], vocab), 1)
    onehot = (iota == ids).astype(tbl_ref.dtype)                 # (tm, vocab)
    o_ref[...] = jnp.dot(onehot, tbl_ref[...],
                         preferred_element_type=jnp.float32).astype(o_ref.dtype)


def _onehot_factorized_kernel(ids_ref, a_ref, b_ref, o_ref, *, vocab):
    ids = ids_ref[...]
    iota = lax.broadcasted_iota(jnp.int32, (ids.shape[0], vocab), 1)
    onehot = (iota == ids).astype(a_ref.dtype)
    rows = jnp.dot(onehot, a_ref[...], preferred_element_type=jnp.float32)
    o_ref[...] = jnp.dot(rows.astype(b_ref.dtype), b_ref[...],
                         preferred_element_type=jnp.float32).astype(o_ref.dtype)


# ----------------------------- HBM-gather kernels -------------------------- #
# Table in HBM; per-row DMAs cross-tile double-buffered into (2, TM, .) staging.

def _dma_gather_kernel(ids_ref, w_hbm, o_ref, stage, sem, *, block_tokens):
    i = pl.program_id(0)
    nsteps = pl.num_programs(0)
    slot = i & 1

    def start_tile(tile, slot_idx):
        base = tile * block_tokens
        def body(t, carry):
            row = ids_ref[base + t]
            pltpu.make_async_copy(w_hbm.at[row], stage.at[slot_idx, t],
                                  sem.at[slot_idx]).start()
            return carry
        lax.fori_loop(0, block_tokens, body, 0, unroll=block_tokens <= 32)

    @pl.when(i == 0)
    def _():                       # prime the pipeline with tile 0
        start_tile(0, 0)

    @pl.when(i + 1 < nsteps)
    def _():                       # prefetch tile i+1 BEFORE waiting on tile i
        start_tile(i + 1, 1 - slot)

    # Wait for this tile's row copies: one shared DMA sem per slot; each wait
    # descriptor matches one row copy's shape/size.
    def wait_body(t, carry):
        pltpu.make_async_copy(w_hbm.at[0], stage.at[slot, 0], sem.at[slot]).wait()
        return carry
    lax.fori_loop(0, block_tokens, wait_body, 0, unroll=block_tokens <= 32)

    # Single local DMA stage -> output block (no TM*D vreg load/store traffic).
    out_cp = pltpu.make_async_copy(stage.at[slot], o_ref, sem.at[2])
    out_cp.start()
    out_cp.wait()


def _dma_factorized_gather_kernel(ids_ref, a_hbm, b_hbm, o_ref, stage, b_vmem,
                                  sem, *, block_tokens):
    i = pl.program_id(0)
    nsteps = pl.num_programs(0)
    slot = i & 1

    def start_tile(tile, slot_idx):
        base = tile * block_tokens
        def body(t, carry):
            row = ids_ref[base + t]
            pltpu.make_async_copy(a_hbm.at[row], stage.at[slot_idx, t],
                                  sem.at[slot_idx]).start()
            return carry
        lax.fori_loop(0, block_tokens, body, 0, unroll=block_tokens <= 32)

    @pl.when(i == 0)
    def _():
        # B is constant across the grid: stage it ONCE into a single VMEM buffer
        # (instead of letting the pipeline double-buffer it).
        b_cp = pltpu.make_async_copy(b_hbm, b_vmem, sem.at[2])
        b_cp.start()
        b_cp.wait()
        start_tile(0, 0)

    @pl.when(i + 1 < nsteps)
    def _():
        start_tile(i + 1, 1 - slot)

    def wait_body(t, carry):
        pltpu.make_async_copy(a_hbm.at[0], stage.at[slot, 0], sem.at[slot]).wait()
        return carry
    lax.fori_loop(0, block_tokens, wait_body, 0, unroll=block_tokens <= 32)

    # One (TM, rank) @ (rank, D_pad) MXU matmul per tile; full weight never built.
    # NOTE: rank >= 128 fills the MXU far better than the D//4 default.
    o_ref[...] = jnp.dot(stage[slot], b_vmem[...],
                         preferred_element_type=jnp.float32).astype(o_ref.dtype)


# ----------------------------- wrappers ------------------------------------ #

def _lookup_vmem_table(ids_flat, weight, block_tokens):
    num_tokens = ids_flat.shape[0]
    vocab, d = weight.shape
    itemsize = jnp.dtype(weight.dtype).itemsize
    d_pad = _round_up(d, _LANES)                       # lane-dense output stores
    w = jnp.pad(weight, ((0, 0), (0, d_pad - d))) if d_pad != d else weight
    table_resident = 2 * vocab * d_pad * itemsize      # pipeline double-buffers it
    per_token = vocab * 4 + 2 * d_pad * itemsize + 2 * 4
    budget = max(_VMEM_WORKSET_BUDGET - table_resident, per_token * _SUBLANES)
    tm_cap = max(_SUBLANES, (budget // per_token) // _SUBLANES * _SUBLANES)
    ids, padded, tm = _prep_ids(ids_flat, vocab, block_tokens, tm_cap)
    out = pl.pallas_call(
        functools.partial(_onehot_gather_kernel, vocab=vocab),
        out_shape=jax.ShapeDtypeStruct((padded, d_pad), weight.dtype),
        grid=(padded // tm,),
        in_specs=[pl.BlockSpec((tm, 1), lambda i: (i, 0)),
                  pl.BlockSpec((vocab, d_pad), lambda i: (0, 0))],
        out_specs=pl.BlockSpec((tm, d_pad), lambda i: (i, 0)),
        compiler_params=pltpu.CompilerParams(
            dimension_semantics=("parallel",),
            vmem_limit_bytes=_VMEM_LIMIT),
        cost_estimate=pl.CostEstimate(
            flops=2 * padded * vocab * d_pad, transcendentals=0,
            bytes_accessed=(vocab * d_pad + padded * d_pad) * itemsize + padded * 4),
    )(ids.reshape(padded, 1), w)
    return out[:num_tokens, :d]


def _lookup_hbm_gather(ids_flat, weight, block_tokens):
    num_tokens = ids_flat.shape[0]
    vocab, d = weight.shape
    itemsize = jnp.dtype(weight.dtype).itemsize
    per_token = 4 * d * itemsize                        # 2x staging + 2x out bufs
    tm_cap = max(_SUBLANES,
                 (_VMEM_WORKSET_BUDGET // per_token) // _SUBLANES * _SUBLANES)
    ids, padded, tm = _prep_ids(ids_flat, vocab, block_tokens, tm_cap)
    out = pl.pallas_call(
        functools.partial(_dma_gather_kernel, block_tokens=tm),
        out_shape=jax.ShapeDtypeStruct((padded, d), weight.dtype),
        grid_spec=pltpu.PrefetchScalarGridSpec(
            num_scalar_prefetch=1,
            grid=(padded // tm,),
            in_specs=[pl.BlockSpec(memory_space=pl.ANY)],   # table stays in HBM
            out_specs=pl.BlockSpec((tm, d), lambda i, ids: (i, 0)),
            scratch_shapes=[
                pltpu.VMEM((2, tm, d), weight.dtype),       # double-buffered gather
                pltpu.SemaphoreType.DMA((3,)),              # slot0 / slot1 / out-copy
            ],
        ),
        compiler_params=pltpu.CompilerParams(
            # Sequential grid: cross-tile prefetch carries DMA state across steps.
            dimension_semantics=("arbitrary",),
            vmem_limit_bytes=_VMEM_LIMIT),
        cost_estimate=pl.CostEstimate(
            flops=0, transcendentals=0,
            bytes_accessed=2 * padded * d * itemsize + padded * 4),
    )(ids, weight)
    return out[:num_tokens]


def _factorized_lookup_vmem_table(ids_flat, weight_a, weight_b, block_tokens):
    num_tokens = ids_flat.shape[0]
    vocab, rank = weight_a.shape
    d = weight_b.shape[1]
    itemsize = jnp.dtype(weight_b.dtype).itemsize
    d_pad = _round_up(d, _LANES)
    b = jnp.pad(weight_b, ((0, 0), (0, d_pad - d))) if d_pad != d else weight_b
    table_resident = 2 * (vocab * rank + rank * d_pad) * itemsize
    per_token = vocab * 4 + rank * 4 + 2 * d_pad * itemsize + 2 * 4
    budget = max(_VMEM_WORKSET_BUDGET - table_resident, per_token * _SUBLANES)
    tm_cap = max(_SUBLANES, (budget // per_token) // _SUBLANES * _SUBLANES)
    ids, padded, tm = _prep_ids(ids_flat, vocab, block_tokens, tm_cap)
    out = pl.pallas_call(
        functools.partial(_onehot_factorized_kernel, vocab=vocab),
        out_shape=jax.ShapeDtypeStruct((padded, d_pad), weight_b.dtype),
        grid=(padded // tm,),
        in_specs=[pl.BlockSpec((tm, 1), lambda i: (i, 0)),
                  pl.BlockSpec((vocab, rank), lambda i: (0, 0)),
                  pl.BlockSpec((rank, d_pad), lambda i: (0, 0))],
        out_specs=pl.BlockSpec((tm, d_pad), lambda i: (i, 0)),
        compiler_params=pltpu.CompilerParams(
            dimension_semantics=("parallel",),
            vmem_limit_bytes=_VMEM_LIMIT),
        cost_estimate=pl.CostEstimate(
            flops=2 * padded * vocab * rank + 2 * padded * rank * d_pad,
            transcendentals=0,
            bytes_accessed=(vocab * rank + rank * d_pad + padded * d_pad) * itemsize
            + padded * 4),
    )(ids.reshape(padded, 1), weight_a, b)
    return out[:num_tokens, :d]


def _factorized_lookup_hbm_gather(ids_flat, weight_a, weight_b, block_tokens):
    num_tokens = ids_flat.shape[0]
    vocab, rank = weight_a.shape
    d = weight_b.shape[1]
    itemsize = jnp.dtype(weight_b.dtype).itemsize
    d_pad = _round_up(d, _LANES)                       # lane-dense matmul stores
    b = jnp.pad(weight_b, ((0, 0), (0, d_pad - d))) if d_pad != d else weight_b
    per_token = (2 * rank + 2 * d_pad) * itemsize
    budget = max(_VMEM_WORKSET_BUDGET - rank * d_pad * itemsize,
                 per_token * _SUBLANES)
    tm_cap = max(_SUBLANES, (budget // per_token) // _SUBLANES * _SUBLANES)
    ids, padded, tm = _prep_ids(ids_flat, vocab, block_tokens, tm_cap)
    out = pl.pallas_call(
        functools.partial(_dma_factorized_gather_kernel, block_tokens=tm),
        out_shape=jax.ShapeDtypeStruct((padded, d_pad), weight_b.dtype),
        grid_spec=pltpu.PrefetchScalarGridSpec(
            num_scalar_prefetch=1,
            grid=(padded // tm,),
            in_specs=[pl.BlockSpec(memory_space=pl.ANY),    # A in HBM (row gather)
                      pl.BlockSpec(memory_space=pl.ANY)],   # B staged once to VMEM
            out_specs=pl.BlockSpec((tm, d_pad), lambda i, ids: (i, 0)),
            scratch_shapes=[
                pltpu.VMEM((2, tm, rank), weight_a.dtype),  # double-buffered A rows
                pltpu.VMEM((rank, d_pad), weight_b.dtype),  # single-buffered B
                pltpu.SemaphoreType.DMA((3,)),
            ],
        ),
        compiler_params=pltpu.CompilerParams(
            dimension_semantics=("arbitrary",),
            vmem_limit_bytes=_VMEM_LIMIT),
        cost_estimate=pl.CostEstimate(
            flops=2 * padded * rank * d_pad, transcendentals=0,
            bytes_accessed=(padded * rank + rank * d_pad + padded * d_pad) * itemsize
            + padded * 4),
    )(ids, weight_a, b)
    return out[:num_tokens, :d]


def _embedding_lookup(ids_flat, weight, block_tokens=None, force_hbm_gather=False):
    vocab, d = weight.shape
    itemsize = jnp.dtype(weight.dtype).itemsize
    d_pad = _round_up(d, _LANES)
    fast = (not force_hbm_gather
            and vocab <= _MAX_ONEHOT_VOCAB
            and vocab * d_pad * itemsize <= _TABLE_VMEM_BUDGET)
    if fast:
        return _lookup_vmem_table(ids_flat, weight, block_tokens)
    return _lookup_hbm_gather(ids_flat, weight, block_tokens)


def _factorized_embedding_lookup(ids_flat, weight_a, weight_b, block_tokens=None,
                                 force_hbm_gather=False):
    vocab, rank = weight_a.shape
    d = weight_b.shape[1]
    itemsize = jnp.dtype(weight_b.dtype).itemsize
    d_pad = _round_up(d, _LANES)
    fast = (not force_hbm_gather
            and vocab <= _MAX_ONEHOT_VOCAB
            and (vocab * rank + rank * d_pad) * itemsize <= _TABLE_VMEM_BUDGET)
    if fast:
        return _factorized_lookup_vmem_table(ids_flat, weight_a, weight_b,
                                             block_tokens)
    return _factorized_lookup_hbm_gather(ids_flat, weight_a, weight_b, block_tokens)


class EfficientEmbeddingLayer:
    """JAX/Pallas port of the PyTorch EfficientEmbeddingLayer forward pass."""

    def __init__(self, num_embeddings, embedding_dim, padding_idx=None,
                 max_norm=None, norm_type=2.0, scale_grad_by_freq=False,
                 sparse=False, factorize=False, rank=None, *, key):
        self.num_embeddings = num_embeddings
        self.embedding_dim = embedding_dim
        self.padding_idx = padding_idx
        self.max_norm = max_norm            # None by default -> no renorm
        self.norm_type = norm_type
        self.scale_grad_by_freq = scale_grad_by_freq
        self.sparse = sparse
        self.use_factorized = factorize

        if factorize:
            rank = rank or embedding_dim // 4
            ka, kb = jax.random.split(key)
            self.weight_A = 0.02 * jax.random.normal(
                ka, (num_embeddings, rank), dtype=jnp.float32)
            self.weight_B = 0.02 * jax.random.normal(
                kb, (rank, embedding_dim), dtype=jnp.float32)
            if padding_idx is not None:
                self.weight_A = self.weight_A.at[padding_idx].set(0.0)
        else:
            self.weight = 0.02 * jax.random.normal(
                key, (num_embeddings, embedding_dim), dtype=jnp.float32)
            if padding_idx is not None:
                self.weight = self.weight.at[padding_idx].set(0.0)

    def __call__(self, x, block_tokens=None):
        ids_flat = x.reshape(-1).astype(jnp.int32)
        if self.use_factorized:
            out = _factorized_embedding_lookup(
                ids_flat, self.weight_A, self.weight_B, block_tokens)
        else:
            out = _embedding_lookup(ids_flat, self.weight, block_tokens)
        return out.reshape(x.shape + (self.embedding_dim,))


# ----------------------------- main ----------------------------------------- #

if __name__ == "__main__":
    key = jax.random.PRNGKey(0)
    k_w, k_wf, k_x = jax.random.split(key, 3)

    num_embeddings = 64
    embedding_dim = 32
    batch, seq = 2, 8
    padding_idx = 0

    x = jax.random.randint(k_x, (batch, seq), 0, num_embeddings, dtype=jnp.int32)
    x = x.at[0, 0].set(padding_idx)

    # --- non-factorized, default path (VMEM one-hot gather, 2 parallel tiles) ---
    emb = EfficientEmbeddingLayer(
        num_embeddings, embedding_dim, padding_idx=padding_idx,
        factorize=False, key=k_w)
    out = jax.block_until_ready(emb(x))
    ref = emb.weight[x]
    assert out.shape == (batch, seq, embedding_dim)
    # MXU f32 passes may round slightly vs. a pure copy -> modest tolerance.
    assert jnp.allclose(out, ref, atol=1e-3), "non-factorized (VMEM path) mismatch"
    assert jnp.allclose(out[0, 0], 0.0, atol=1e-6), "padding row should be zero"

    # --- non-factorized, forced HBM-gather path (double-buffered row DMAs) ---
    out_hbm = jax.block_until_ready(
        _embedding_lookup(x.reshape(-1), emb.weight, force_hbm_gather=True))
    assert jnp.allclose(out_hbm.reshape(batch, seq, embedding_dim), ref,
                        atol=1e-6), "non-factorized (HBM path) mismatch"

    # --- factorized, default path (VMEM one-hot + two MXU matmuls) ---
    emb_f = EfficientEmbeddingLayer(
        num_embeddings, embedding_dim, padding_idx=padding_idx,
        factorize=True, key=k_wf)
    out_f = jax.block_until_ready(emb_f(x))
    ref_f = (emb_f.weight_A @ emb_f.weight_B)[x]
    assert out_f.shape == (batch, seq, embedding_dim)
    assert jnp.allclose(out_f, ref_f, atol=1e-4), "factorized (VMEM path) mismatch"
    assert jnp.allclose(out_f[0, 0], 0.0, atol=1e-6), \
        "factorized padding row should be zero"

    # --- factorized, forced HBM-gather path (A-row DMAs + (TM,r)@(r,D) MXU) ---
    out_f_hbm = jax.block_until_ready(
        _factorized_embedding_lookup(
            x.reshape(-1), emb_f.weight_A, emb_f.weight_B,
            force_hbm_gather=True))
    assert jnp.allclose(out_f_hbm.reshape(batch, seq, embedding_dim), ref_f,
                        atol=1e-4), "factorized (HBM path) mismatch"

    print("KERNEL_OK")
</pallas_src>

<mosaic_0001>
module attributes {stable_mosaic.version = 11 : i64} {
  func.func @_onehot_gather_kernel(%arg0: i32, %arg1: memref<8x1xi32, #tpu.memory_space<vmem>>, %arg2: memref<64x128xf32, #tpu.memory_space<vmem>>, %arg3: memref<8x128xf32, #tpu.memory_space<vmem>>) attributes {dimension_semantics = [#tpu.dimension_semantics<parallel>], iteration_bounds = array<i64: 2>, scalar_prefetch = 0 : i64, scratch_operands = 0 : i64, tpu.core_type = #tpu.core_type<tc>, window_params = [{transform_indices = @transform_0, window_bounds = array<i64: 8, 1>}, {pipeline_mode = #tpu.pipeline_mode<synchronous>, transform_indices = @transform_1, window_bounds = array<i64: 64, 128>}, {transform_indices = @transform_2, window_bounds = array<i64: 8, 128>}]} {
    %c0 = arith.constant 0 : index
    %c0_0 = arith.constant 0 : index
    %0 = vector.load %arg1[%c0, %c0_0] : memref<8x1xi32, #tpu.memory_space<vmem>>, vector<8x1xi32>
    %1 = tpu.iota {dimensions = array<i32: 1>} : vector<8x64xi32>
    %2 = vector.broadcast %0 : vector<8x1xi32> to vector<8x64xi32>
    %3 = arith.cmpi eq, %1, %2 : vector<8x64xi32>
    %4 = arith.extui %3 : vector<8x64xi1> to vector<8x64xi32>
    %5 = arith.sitofp %4 : vector<8x64xi32> to vector<8x64xf32>
    %c0_1 = arith.constant 0 : index
    %c0_2 = arith.constant 0 : index
    %6 = vector.load %arg2[%c0_1, %c0_2] : memref<64x128xf32, #tpu.memory_space<vmem>>, vector<64x128xf32>
    %cst = arith.constant dense<0.000000e+00> : vector<8x128xf32>
    %7 = tpu.matmul %5, %6, %cst {dimension_numbers = #tpu.dot_dimension_numbers<[1], [0], [0], [1], [0, 0, 1, 1], [], []>} : vector<8x64xf32>, vector<64x128xf32>, vector<8x128xf32> -> vector<8x128xf32>
    %c0_3 = arith.constant 0 : index
    %c0_4 = arith.constant 0 : index
    %8 = vector.load %arg3[%c0_3, %c0_4] : memref<8x128xf32, #tpu.memory_space<vmem>>, vector<8x128xf32>
    tpu.vector_store %arg3[%c0_3, %c0_4], %7 {strides = array<i32>} : memref<8x128xf32, #tpu.memory_space<vmem>>, vector<8x128xf32>,
    return
  }
  func.func @transform_0(%arg0: i32) -> (i32, i32) {
    %c0_i32 = arith.constant 0 : i32
    %c0_i32_0 = arith.constant 0 : i32
    return %arg0, %c0_i32 : i32, i32
  }
  func.func @transform_1(%arg0: i32) -> (i32, i32) {
    %c0_i32 = arith.constant 0 : i32
    %c0_i32_0 = arith.constant 0 : i32
    %c0_i32_1 = arith.constant 0 : i32
    return %c0_i32, %c0_i32_0 : i32, i32
  }
  func.func @transform_2(%arg0: i32) -> (i32, i32) {
    %c0_i32 = arith.constant 0 : i32
    %c0_i32_0 = arith.constant 0 : i32
    return %arg0, %c0_i32 : i32, i32
  }
}

</mosaic_0001>

<llo_original>
// kernel: tpu_custom_call.1
$region0: #{tpu_custom_call.1}
  #allocation0 [shape = 'u32[]', space=smem, size = 0x4, offset = 0x4, fixed_abs, tag = 'smem constant byte address 0x4 - core index']
  #allocation1 [shape = 'u32[72,128]{1,0:T(1,128)}', space=vmem, size = 0x9000, scoped, tag = 'internal scratch']
  %s0 = inlined_call_operand.vmem [shape: s32[16,1], index: 0, kind: input, shape index: {}]
  %s1 = inlined_call_operand.hbm [shape: f32[64,128], index: 1, kind: input, shape index: {}]
  %s2 = inlined_call_operand.hbm [shape: f32[16,128], index: 2, kind: output, shape index: {}]
  %s3 = sld [smem:[#allocation0]]
  $region45: #{tpu_custom_call.1} parent=0
    _
  %s5 = ssub.s32 1, %s3
  %s6 = scalar_select 0, %s5, %s3
  $region1: #{tpu_custom_call.1} parent=0
    #allocation2 [shape = 'u8[32768]{0}', space=vmem, size = 0x8000, scoped, tag = 'input window, operand 1, single buffered']
    #allocation3 [shape = 's32[2]{0}', space=sflag, size = 0x8, scoped, tag = 'scoped memory for tpu_custom_call.1']
    #allocation4 [shape = 's32[2]{0}', space=sflag, size = 0x8, scoped, tag = 'scoped memory for tpu_custom_call.1']
    #allocation5 [shape = 'u8[8192]{0}', space=vmem, size = 0x2000, scoped, tag = 'output window, operand 0']
    %7 = vsyncpa [#allocation3], 0
    %8 = vsyncpa [#allocation4], 0
    %s9 = scalar_lea.sflag [#allocation4], 1
    %10 = vsyncpa %s9, 0
    loop: start=0, step=1, limit=4
    $region2: #{tpu_custom_call.1} parent=1 // loop_pre_header
      _
    $region3: #{tpu_custom_call.1} parent=1 // loop_header
      %s12 = sphi 0, %s16
      %p13 = scmp.ge.s32.totalorder %s12, 4
      %s22 = sphi 0, %s24
      %s25 = sphi 0, %s22
      %s26 = sphi 0, %s25
      %s42 = sphi 0, %s26
      %s46 = sphi 0, %s46
      %s48 = sphi 0, %s46
      %s49 = sphi 0, %s48
      %s63 = sphi 0, %s49
      %s69 = sphi 0, %s71
      %s72 = sphi 0, %s69
      %s73 = sphi 0, %s72
      %s89 = sphi 0, %s73
    $region4: #{tpu_custom_call.1} parent=1 // loop_header_branch
      %15 = sbr.rel (%p13) target = $region8
    $region5: #{tpu_custom_call.1} parent=1 // loop_body
      %s17 = ssub.s32 %s12, 1
      %s18 = ssub.s32 %s12, 2
      %s19 = sadd.s32 %s12, 1
      %s20 = ssub.s32 %s12, %s19
      %p21 = scmp.eq.s32.totalorder %s20, 0
      %s23 = sadd.s32 %s22, 1
      %s24 = scalar_select %p21, %s22, %s23
      %p27 = pneg %p21
      %p28 = scmp.eq.s32.totalorder %s12, 1
      %p29 = por %p27, %p28
      %p30 = scmp.ne.s32.totalorder %s22, %s25
      %p31 = scmp.eq.s32.totalorder %s12, 0
      %p32 = por %p30, %p31
      %p33 = scmp.ne.s32.totalorder %s22, %s25
      %p34 = scmp.eq.s32.totalorder %s17, 1
      %p35 = por %p33, %p34
      %p36 = scmp.ne.s32.totalorder %s25, %s26
      %p37 = scmp.eq.s32.totalorder %s17, 0
      %p38 = por %p36, %p37
      %p39 = scmp.ne.s32.totalorder %s25, %s26
      %p40 = scmp.eq.s32.totalorder %s18, 1
      %p41 = por %p39, %p40
      %p43 = scmp.ne.s32.totalorder %s26, %s42
      %p44 = scmp.eq.s32.totalorder %s18, 0
      %p45 = por %p43, %p44
      %s47 = sadd.s32 %s46, 1
      %p50 = scmp.eq.s32.totalorder %s12, 1
      %p51 = scmp.ne.s32.totalorder %s46, %s48
      %p52 = scmp.eq.s32.totalorder %s12, 0
      %p53 = por %p51, %p52
      %p54 = scmp.ne.s32.totalorder %s46, %s48
      %p55 = scmp.eq.s32.totalorder %s17, 1
      %p56 = por %p54, %p55
      %p57 = scmp.ne.s32.totalorder %s48, %s49
      %p58 = scmp.eq.s32.totalorder %s17, 0
      %p59 = por %p57, %p58
      %p60 = scmp.ne.s32.totalorder %s48, %s49
      %p61 = scmp.eq.s32.totalorder %s18, 1
      %p62 = por %p60, %p61
      %p64 = scmp.ne.s32.totalorder %s49, %s63
      %p65 = scmp.eq.s32.totalorder %s18, 0
      %p66 = por %p64, %p65
      %s67 = ssub.s32 %s12, %s19
      %p68 = scmp.eq.s32.totalorder %s67, 0
      %s70 = sadd.s32 %s69, 1
      %s71 = scalar_select %p68, %s69, %s70
      %p74 = pneg %p68
      %p75 = scmp.eq.s32.totalorder %s12, 1
      %p76 = por %p74, %p75
      %p77 = scmp.ne.s32.totalorder %s69, %s72
      %p78 = scmp.eq.s32.totalorder %s12, 0
      %p79 = por %p77, %p78
      %p80 = scmp.ne.s32.totalorder %s69, %s72
      %p81 = scmp.eq.s32.totalorder %s17, 1
      %p82 = por %p80, %p81
      %p83 = scmp.ne.s32.totalorder %s72, %s73
      %p84 = scmp.eq.s32.totalorder %s17, 0
      %p85 = por %p83, %p84
      %p86 = scmp.ne.s32.totalorder %s72, %s73
      %p87 = scmp.eq.s32.totalorder %s18, 1
      %p88 = por %p86, %p87
      %p90 = scmp.ne.s32.totalorder %s73, %s89
      %p91 = scmp.eq.s32.totalorder %s18, 0
      %p92 = por %p90, %p91
      %p93 = scmp.le.s32.totalorder 1, %s12
      %p94 = scmp.lt.s32.totalorder %s12, 3
      %p95 = pnand %p93, %p94
      %p96 = pneg %p95
      // Predicated region
      $region9: #{tpu_custom_call.1} parent=5 // pred_check
        _
      $region10: #{tpu_custom_call.1} parent=5 // pred_check_branch
        %98 = sbr.rel (%p95) target = $region12
      $region11: #{tpu_custom_call.1} parent=5 // pred_region
        %s99 = ssub.s32 %s12, 1
        // Predicated region
        $region13: #{tpu_custom_call.1} parent=11 // pred_check
          %p100 = pneg %p59
        $region14: #{tpu_custom_call.1} parent=11 // pred_check_branch
          %102 = sbr.rel (%p100) target = $region16
        $region15: #{tpu_custom_call.1} parent=11 // pred_region
          %104 = vsyncadd [#allocation3], 0
          %s105 = sshll.u32 %s1, 4
          %s106 = int_to_ptr.hbm [resolvable:$true] %s105
          %s107 = sshll.u32 [#allocation2], 4
          %s108 = int_to_ptr.vmem [resolvable:$true] %s107
          %113 = dma.hbm_to_vmem [thread:$0]  %s106, 1024, %s108, [#allocation3], 128, 128, 8
        $region16: #{tpu_custom_call.1} parent=11 // pred_fallthru
          _
      $region12: #{tpu_custom_call.1} parent=5 // pred_fallthru
        _
      %p114 = scmp.lt.s32.totalorder %s12, 2
      // Predicated region
      $region17: #{tpu_custom_call.1} parent=5 // pred_check
        %p115 = pneg %p114
      $region18: #{tpu_custom_call.1} parent=5 // pred_check_branch
        %117 = sbr.rel (%p115) target = $region20
      $region19: #{tpu_custom_call.1} parent=5 // pred_region
        // Predicated region
        $region21: #{tpu_custom_call.1} parent=19 // pred_check
          %p118 = pneg %p32
        $region22: #{tpu_custom_call.1} parent=19 // pred_check_branch
          %120 = sbr.rel (%p118) target = $region24
        $region23: #{tpu_custom_call.1} parent=19 // pred_region
          %p121 = scmp.lt.s32.totalorder %s12, 1
          %s122 = scalar_select %p121, %s12, 1
          %s123 = smul.addr %s122, 8
          %s124 = scalar_lea.vmem %s0, %s123
        $region24: #{tpu_custom_call.1} parent=19 // pred_fallthru
          _
      $region20: #{tpu_custom_call.1} parent=5 // pred_fallthru
        _
      %p125 = scmp.le.s32.totalorder 1, %s12
      %p126 = scmp.lt.s32.totalorder %s12, 3
      %p127 = pnand %p125, %p126
      %p128 = pneg %p127
      // Predicated region
      $region25: #{tpu_custom_call.1} parent=5 // pred_check
        _
      $region26: #{tpu_custom_call.1} parent=5 // pred_check_branch
        %130 = sbr.rel (%p127) target = $region28
      $region27: #{tpu_custom_call.1} parent=5 // pred_region
        %s131 = ssub.s32 %s12, 1
        // Predicated region
        $region29: #{tpu_custom_call.1} parent=27 // pred_check
          %p132 = pneg %p59
        $region30: #{tpu_custom_call.1} parent=27 // pred_check_branch
          %134 = sbr.rel (%p132) target = $region32
        $region31: #{tpu_custom_call.1} parent=27 // pred_region
          %136 = dma.done [#allocation3], 1024
        $region32: #{tpu_custom_call.1} parent=27 // pred_fallthru
          _
        %p137 = scmp.lt.s32.totalorder %s17, 1
        %s138 = scalar_select %p137, %s17, 1
        %s139 = smul.addr %s138, 8
        %s140 = scalar_lea.vmem %s0, %s139
        %p141 = pneg %p38
        %p142 = pneg %p35
        %p143 = pneg %p59
        %p144 = pneg %p56
        %p145 = pneg %p85
        %p146 = pneg %p82
        %s147 = sand.u32 %s72, 1
        %s148 = scalar_lea.sflag [#allocation4], %s147
        %s149 = sand.u32 %s72, 1
        %s150 = smul.addr %s149, 8
        %s151 = scalar_lea.vmem [#allocation5], %s150
        %p152 = scmp.lt.s32.totalorder %s17, 1
        %s153 = scalar_select %p152, %s17, 1
        %s154 = smul.addr %s153, 8
        %s155 = scalar_lea.vmem %s0, %s154
        %v156 = vld [vmem:[%s155] sm:$0xff]
        %v157 = vlaneseq
        %v158 = vand.u32 %v157, 127
        %159 = vset.pattern.permute.xlu0 0
        %160 = vperm.xlu0 %159, %v156
        %v161 = vpop.permute.xlu0 %160
        %vm162 = vcmp.eq.s32.totalorder %v158, %v161
        %v163 = vsel %vm162, 1, 0
        %v164 = vcvt.s32.f32 %v163
        %v165 = vld [vmem:[#allocation2] sm:$0xff]
        %v166 = vld [vmem:[#allocation2 + $0x8] sm:$0xff]
        %v167 = vld [vmem:[#allocation2 + $0x10] sm:$0xff]
        %v168 = vld [vmem:[#allocation2 + $0x18] sm:$0xff]
        %v169 = vld [vmem:[#allocation2 + $0x20] sm:$0xff]
        %v170 = vld [vmem:[#allocation2 + $0x28] sm:$0xff]
        %v171 = vld [vmem:[#allocation2 + $0x30] sm:$0xff]
        %v172 = vld [vmem:[#allocation2 + $0x38] sm:$0xff]
        %vm173 = vcmask 523264
        %v175 = vsel %vm173, %v164, 0
        %177 = vmatpush.msra.mxu0 0.0
        %178 = vmatpush.msra.mxu0 0.0
        %179 = vmatpush.msra.mxu0 0.0
        %180 = vmatpush.msra.mxu0 0.0
        %181 = vmatpush.msra.mxu0 0.0
        %182 = vmatpush.msra.mxu0 0.0
        %183 = vmatpush.msra.mxu0 0.0
        %184 = vmatpush.msra.mxu0 0.0
        %185 = vmatpush.msra.mxu0 %v172
        %186 = vmatpush.msra.mxu0 %v171
        %187 = vmatpush.msra.mxu0 %v170
        %188 = vmatpush.msra.mxu0 %v169
        %189 = vmatpush.msra.mxu0 %v168
        %190 = vmatpush.msra.mxu0 %v167
        %191 = vmatpush.msra.mxu0 %v166
        %192 = vmatpush.msra.mxu0 %v165
        %193 = vmatmul.f32.gmra.mxu0 %v175
        %v194 = vpop.f32.mrf.mxu0
        %v195 = vadd.f32 0.0, %v194
        %196 = vdwg.mxu0
        %197 = vst [vmem:[%s151] sm:$0xff] %v195
        %s198 = sand.u32 %s72, 1
        %s199 = scalar_lea.sflag [#allocation4], %s198
        %s200 = sand.u32 %s72, 1
        %s201 = smul.addr %s200, 8
        %s202 = scalar_lea.vmem [#allocation5], %s201
        // Predicated region
        $region33: #{tpu_custom_call.1} parent=27 // pred_check
          %p203 = pneg %p82
        $region34: #{tpu_custom_call.1} parent=27 // pred_check_branch
          %205 = sbr.rel (%p203) target = $region36
        $region35: #{tpu_custom_call.1} parent=27 // pred_region
          %207 = vsyncadd %s199, 0
          %s208 = smul.addr %s17, 8
          %s209 = scalar_lea.hbm %s2, %s208
          %s211 = sshll.u32 %s202, 4
          %s212 = int_to_ptr.vmem [resolvable:$true] %s211
          %s213 = sshll.u32 %s209, 4
          %s214 = int_to_ptr.hbm [resolvable:$true] %s213
          %216 = dma.vmem_to_hbm [thread:$0]  %s212, 128, %s214, %s199
        $region36: #{tpu_custom_call.1} parent=27 // pred_fallthru
          _
      $region28: #{tpu_custom_call.1} parent=5 // pred_fallthru
        _
      %p217 = scmp.le.s32.totalorder 2, %s12
      // Predicated region
      $region37: #{tpu_custom_call.1} parent=5 // pred_check
        %p218 = pneg %p217
      $region38: #{tpu_custom_call.1} parent=5 // pred_check_branch
        %220 = sbr.rel (%p218) target = $region40
      $region39: #{tpu_custom_call.1} parent=5 // pred_region
        %s221 = ssub.s32 %s12, 2
        // Predicated region
        $region41: #{tpu_custom_call.1} parent=39 // pred_check
          %p222 = pneg %p88
        $region42: #{tpu_custom_call.1} parent=39 // pred_check_branch
          %224 = sbr.rel (%p222) target = $region44
        $region43: #{tpu_custom_call.1} parent=39 // pred_region
          %s225 = sand.u32 %s73, 1
          %s226 = scalar_lea.sflag [#allocation4], %s225
          %s227 = sand.u32 %s73, 1
          %s228 = smul.addr %s227, 8
          %s229 = scalar_lea.vmem [#allocation5], %s228
          %231 = dma.done %s226, 128
        $region44: #{tpu_custom_call.1} parent=39 // pred_fallthru
          _
      $region40: #{tpu_custom_call.1} parent=5 // pred_fallthru
        _
    $region6: #{tpu_custom_call.1} parent=1 // loop_footer
      %s16 = sadd.s32 1, %s12
    $region7: #{tpu_custom_call.1} parent=1 // loop_footer_branch
      %11 = sbr.rel target = $region3
    $region8: #{tpu_custom_call.1} parent=1 // loop_exit
      _
    %232 = vsyncpa [#allocation3], 1
    %s233 = scalar_lea.sflag [#allocation3], 1
    %234 = vsyncpa %s233, 1
    %235 = vsyncpa [#allocation4], 1
    %s236 = scalar_lea.sflag [#allocation4], 1
    %237 = vsyncpa %s236, 1

</llo_original>
